<compile_context>
chip_gen: v7x
topology: tpu7x:2x2x1
jax: 0.10.0
libtpu: 0.0.40
codegen_flags: <defaults>
</compile_context>

<pallas_src>
import functools

import jax
import jax.numpy as jnp
from jax.experimental import pallas as pl
from jax.experimental.pallas import tpu as pltpu


_DEFAULT_MAX_TR = 512      # rows per row tile (multiple of 8 and 128)
_DEFAULT_MAX_TN = 2048     # lanes per N tile (multiple of 128); 512*2048*4B = 4 MiB/buffer
_PALLAS_MIN_ELEMS = 64 * 1024   # below this, plain jnp.max (fused by XLA) wins


def _max_pool_kernel(x_ref, o_ref, acc_ref, *, n_total, tn, grid_n, fill):
    """Max over the last (lane) axis of a (tr, N) slab; N tiled along grid axis 1."""
    if grid_n == 1:
        # Whole reduction axis in one block: a single cross-lane reduce per
        # row tile, no accumulator needed.
        o_ref[...] = jnp.max(x_ref[...], axis=-1)[None, :].astype(o_ref.dtype)
        return

    n_idx = pl.program_id(1)

    @pl.when(n_idx == 0)
    def _init():
        acc_ref[...] = jnp.full_like(acc_ref, fill)

    needs_mask = (n_total % tn) != 0
    acc_dtype = acc_ref.dtype

    # Running combine on the VPU: elementwise max of 128-lane chunks into a
    # (tr, 128) accumulator. The single cross-lane (XLU) reduce per row tile
    # happens only on the last N step (below).
    for k in range(tn // 128):
        chunk = x_ref[:, k * 128:(k + 1) * 128].astype(acc_dtype)
        if needs_mask:
            # Last (partial) N tile: out-of-range columns must not win the max.
            col = jax.lax.broadcasted_iota(jnp.int32, chunk.shape, 1) + k * 128
            chunk = jnp.where(n_idx * tn + col < n_total, chunk, fill)
        acc_ref[...] = jnp.maximum(acc_ref[...], chunk)

    @pl.when(n_idx == grid_n - 1)
    def _finalize():
        o_ref[...] = jnp.max(acc_ref[...], axis=-1)[None, :].astype(o_ref.dtype)


def _max_pool_pallas(x, *, max_tr=_DEFAULT_MAX_TR, max_tn=_DEFAULT_MAX_TN):
    """Max over the last axis of a (B, C, N) array via a Pallas TPU kernel."""
    B, C, N = x.shape
    R = B * C
    xf = x.reshape(R, N)

    if jnp.issubdtype(x.dtype, jnp.floating):
        acc_dtype, fill = jnp.float32, float("-inf")
    else:
        acc_dtype, fill = jnp.int32, int(jnp.iinfo(jnp.int32).min)

    # Row tile: large (multiple of 128 so the lane-dense output block is legal),
    # or the full row extent for small problems.
    tr = R if R <= max_tr else max_tr
    # N tile: full extent if it fits the VMEM budget, otherwise a 128-multiple
    # with a running-max accumulator across N grid steps.
    if N <= max_tn:
        tn, grid_n = N, 1
    else:
        tn, grid_n = max_tn, pl.cdiv(N, max_tn)
    grid_r = pl.cdiv(R, tr)

    kernel = functools.partial(
        _max_pool_kernel, n_total=N, tn=tn, grid_n=grid_n, fill=fill)

    out = pl.pallas_call(
        kernel,
        out_shape=jax.ShapeDtypeStruct((1, R), x.dtype),
        grid_spec=pltpu.PrefetchScalarGridSpec(
            num_scalar_prefetch=0,
            grid=(grid_r, grid_n),                       # reduction axis last
            in_specs=[pl.BlockSpec((tr, tn), lambda r, n: (r, n))],
            # Lane-dense output: one (1, tr) row of results per row tile,
            # resident across the N axis (block index independent of n).
            out_specs=pl.BlockSpec((1, tr), lambda r, n: (0, r)),
            scratch_shapes=[pltpu.VMEM((tr, 128), acc_dtype)],
        ),
        compiler_params=pltpu.CompilerParams(
            dimension_semantics=("parallel", "arbitrary"),
            # ~8.3 MiB working set at the largest tile; 32 MiB gives headroom
            # on every generation (v7x physical VMEM is only 64 MiB).
            vmem_limit_bytes=32 * 1024 * 1024,
        ),
    )(xf)
    return out.reshape(B, C, 1)


def max_pool_layer(x, dim=2, *, use_pallas=None):
    """Max pooling over all nodes: input.max(dim=2, keepdim=True) for (B, C, N)."""
    assert x.ndim == 3 and dim in (2, -1), "kernel implemented for dim=2 (node axis)"
    if use_pallas is None:
        use_pallas = x.size >= _PALLAS_MIN_ELEMS
    if not use_pallas:
        # Tiny problems: pallas_call launch/DMA-setup overhead dominates.
        return jnp.max(x, axis=2, keepdims=True)
    return _max_pool_pallas(x)


if __name__ == "__main__":
    key = jax.random.PRNGKey(0)

    # 1) Small MPNN-like shape (batch, feature_dim, num_nodes); force the
    #    Pallas path so the kernel itself runs (single-N-step code path).
    B, C, N = 2, 32, 16
    x = jax.random.normal(key, (B, C, N), dtype=jnp.float32)
    out = jax.block_until_ready(max_pool_layer(x, dim=2, use_pallas=True))
    ref = jnp.max(x, axis=2, keepdims=True)
    assert out.shape == (B, C, 1), out.shape
    assert jnp.array_equal(out, ref), "mismatch vs reference (small case)"

    # 2) Exercise the tiled path (row tiles, N tiles, partial-tile masking,
    #    running-max accumulator) with small forced tile sizes.
    B2, C2, N2 = 2, 128, 320            # R = 256 rows; N not a multiple of tn
    x2 = jax.random.normal(jax.random.PRNGKey(1), (B2, C2, N2), dtype=jnp.float32)
    out2 = jax.block_until_ready(_max_pool_pallas(x2, max_tr=128, max_tn=128))
    ref2 = jnp.max(x2, axis=2, keepdims=True)
    assert out2.shape == (B2, C2, 1), out2.shape
    assert jnp.array_equal(out2, ref2), "mismatch vs reference (tiled case)"

    # 3) Size-gated module-level wrapper (jnp.max fast path for tiny input).
    out3 = jax.block_until_ready(max_pool_layer(x, dim=2))
    assert jnp.array_equal(out3, ref)

    print("KERNEL_OK")
</pallas_src>

<mosaic_0001>
module attributes {stable_mosaic.version = 11 : i64} {
  func.func @_max_pool_kernel(%arg0: i32, %arg1: i32, %arg2: memref<64x16xf32, #tpu.memory_space<vmem>>, %arg3: memref<1x64xf32, #tpu.memory_space<vmem>>, %arg4: memref<64x128xf32, #tpu.memory_space<vmem>>) attributes {dimension_semantics = [#tpu.dimension_semantics<parallel>, #tpu.dimension_semantics<arbitrary>], iteration_bounds = array<i64: 1, 1>, scalar_prefetch = 0 : i64, scratch_operands = 1 : i64, tpu.core_type = #tpu.core_type<tc>, window_params = [{transform_indices = @transform_0, window_bounds = array<i64: 64, 16>}, {transform_indices = @transform_1, window_bounds = array<i64: 1, 64>}]} {
    %c0 = arith.constant 0 : index
    %c0_0 = arith.constant 0 : index
    %0 = vector.load %arg2[%c0, %c0_0] : memref<64x16xf32, #tpu.memory_space<vmem>>, vector<64x16xf32>
    %cst = arith.constant dense<0xFF800000> : vector<64xf32>
    %1 = vector.multi_reduction <maximumf>, %0, %cst [1] : vector<64x16xf32> to vector<64xf32>
    %2 = vector.shape_cast %1 : vector<64xf32> to vector<1x64xf32>
    %c0_1 = arith.constant 0 : index
    %c0_2 = arith.constant 0 : index
    %3 = vector.load %arg3[%c0_1, %c0_2] : memref<1x64xf32, #tpu.memory_space<vmem>>, vector<1x64xf32>
    tpu.vector_store %arg3[%c0_1, %c0_2], %2 {strides = array<i32>} : memref<1x64xf32, #tpu.memory_space<vmem>>, vector<1x64xf32>,
    return
  }
  func.func @transform_0(%arg0: i32, %arg1: i32) -> (i32, i32) {
    %c0_i32 = arith.constant 0 : i32
    return %arg0, %arg1 : i32, i32
  }
  func.func @transform_1(%arg0: i32, %arg1: i32) -> (i32, i32) {
    %c0_i32 = arith.constant 0 : i32
    %c0_i32_0 = arith.constant 0 : i32
    return %c0_i32, %arg0 : i32, i32
  }
}

</mosaic_0001>

<llo_original>
// kernel: tpu_custom_call.1
$region0: #{tpu_custom_call.1}
  #allocation0 [shape = 'u32[]', space=smem, size = 0x4, offset = 0x4, fixed_abs, tag = 'smem constant byte address 0x4 - core index']
  #allocation1 [shape = 'u32[144,128]{1,0:T(1,128)}', space=vmem, size = 0x12000, scoped, tag = 'internal scratch']
  #allocation2 [shape = 'f32[64,128]{1,0:T(8,128)}', space=vmem, size = 0x8000, scoped, tag = 'scratch operand']
  %s0 = inlined_call_operand.vmem [shape: f32[64,16], index: 0, kind: input, shape index: {}]
  %s1 = inlined_call_operand.hbm [shape: f32[1,64], index: 1, kind: output, shape index: {}]
  %s2 = sld [smem:[#allocation0]]
  $region14: #{tpu_custom_call.1} parent=0
    _
  %s4 = ssub.s32 1, %s2
  %s5 = scalar_select 0, %s4, %s2
  $region1: #{tpu_custom_call.1} parent=0
    #allocation3 [shape = 'u8[512]{0}', space=vmem, size = 0x400, scoped, tag = 'output window, operand 0, single buffered']
    #allocation4 [shape = 's32[1]{0}', space=sflag, size = 0x4, scoped, tag = 'scoped memory for tpu_custom_call.1']
    %6 = vsyncpa [#allocation4], 0
    // Predicated region
    $region2: #{tpu_custom_call.1} parent=1 // pred_check
      _
    $region3: #{tpu_custom_call.1} parent=1 // pred_check_branch
      %8 = sbr.rel (0) target = $region5
    $region4: #{tpu_custom_call.1} parent=1 // pred_region
      _
    $region5: #{tpu_custom_call.1} parent=1 // pred_fallthru
      _
    %v9 = vld [vmem:[%s0] sm:$0xff]
    %v10 = vld [vmem:[%s0 + $0x8] sm:$0xff]
    %v11 = vld [vmem:[%s0 + $0x10] sm:$0xff]
    %v12 = vld [vmem:[%s0 + $0x18] sm:$0xff]
    %v13 = vld [vmem:[%s0 + $0x20] sm:$0xff]
    %v14 = vld [vmem:[%s0 + $0x28] sm:$0xff]
    %v15 = vld [vmem:[%s0 + $0x30] sm:$0xff]
    %v16 = vld [vmem:[%s0 + $0x38] sm:$0xff]
    %vm17 = vcmask 130048
    %v18 = vsel %vm17, %v9, -inf
    %19 = vmax.xlane.f32.xlu0 %v18
    %v20 = vpop.xlane.xlu0 %19
    %v21 = vsel %vm17, %v10, -inf
    %22 = vmax.xlane.f32.xlu0 %v21
    %v23 = vpop.xlane.xlu0 %22
    %v24 = vsel %vm17, %v11, -inf
    %25 = vmax.xlane.f32.xlu0 %v24
    %v26 = vpop.xlane.xlu0 %25
    %v27 = vsel %vm17, %v12, -inf
    %28 = vmax.xlane.f32.xlu0 %v27
    %v29 = vpop.xlane.xlu0 %28
    %v30 = vsel %vm17, %v13, -inf
    %31 = vmax.xlane.f32.xlu0 %v30
    %v32 = vpop.xlane.xlu0 %31
    %v33 = vsel %vm17, %v14, -inf
    %34 = vmax.xlane.f32.xlu0 %v33
    %v35 = vpop.xlane.xlu0 %34
    %v36 = vsel %vm17, %v15, -inf
    %37 = vmax.xlane.f32.xlu0 %v36
    %v38 = vpop.xlane.xlu0 %37
    %v39 = vsel %vm17, %v16, -inf
    %40 = vmax.xlane.f32.xlu0 %v39
    %v41 = vpop.xlane.xlu0 %40
    %v50 = vlaneseq
    %v51 = vand.u32 %v50, 127
    %v52 = vlaneseq
    %v53 = vshrl.u32 %v52, 7
    %v54 = vsub.s32 %v51, %v53
    %v55 = vrot.slane %v20, %v54
    %v56 = vadd.s32 %v51, 4294967288
    %v57 = vlaneseq
    %v58 = vshrl.u32 %v57, 7
    %v59 = vsub.s32 %v56, %v58
    %v60 = vrot.slane %v23, %v59
    %vm61 = vcmask 130112
    %v62 = vsel %vm61, %v60, %v55
    %v63 = vadd.s32 %v51, 4294967280
    %v64 = vlaneseq
    %v65 = vshrl.u32 %v64, 7
    %v66 = vsub.s32 %v63, %v65
    %v67 = vrot.slane %v26, %v66
    %vm68 = vcmask 195712
    %v69 = vsel %vm68, %v67, %v62
    %v70 = vadd.s32 %v51, 4294967272
    %v71 = vlaneseq
    %v72 = vshrl.u32 %v71, 7
    %v73 = vsub.s32 %v70, %v72
    %v74 = vrot.slane %v29, %v73
    %vm75 = vcmask 261312
    %v76 = vsel %vm75, %v74, %v69
    %v77 = vadd.s32 %v51, 4294967264
    %v78 = vlaneseq
    %v79 = vshrl.u32 %v78, 7
    %v80 = vsub.s32 %v77, %v79
    %v81 = vrot.slane %v32, %v80
    %vm82 = vcmask 326912
    %v83 = vsel %vm82, %v81, %v76
    %v84 = vadd.s32 %v51, 4294967256
    %v85 = vlaneseq
    %v86 = vshrl.u32 %v85, 7
    %v87 = vsub.s32 %v84, %v86
    %v88 = vrot.slane %v35, %v87
    %vm89 = vcmask 392512
    %v90 = vsel %vm89, %v88, %v83
    %v91 = vadd.s32 %v51, 4294967248
    %v92 = vlaneseq
    %v93 = vshrl.u32 %v92, 7
    %v94 = vsub.s32 %v91, %v93
    %v95 = vrot.slane %v38, %v94
    %vm96 = vcmask 458112
    %v97 = vsel %vm96, %v95, %v90
    %v98 = vadd.s32 %v51, 4294967240
    %v99 = vlaneseq
    %v100 = vshrl.u32 %v99, 7
    %v101 = vsub.s32 %v98, %v100
    %v102 = vrot.slane %v41, %v101
    %vm103 = vcmask 523712
    %v104 = vsel %vm103, %v102, %v97
    %vm106 = vcmask 516096
    %107 = vst.msk [vmem:[#allocation3] sm:$0x1] %vm106, %v104
    // Predicated region
    $region6: #{tpu_custom_call.1} parent=1 // pred_check
      _
    $region7: #{tpu_custom_call.1} parent=1 // pred_check_branch
      %109 = sbr.rel (0) target = $region9
    $region8: #{tpu_custom_call.1} parent=1 // pred_region
      %s111 = ssub.s32 16, 16
      %112 = vsyncadd [#allocation4], %s111
      %s114 = sshll.u32 [#allocation3], 4
      %s115 = int_to_ptr.vmem [resolvable:$true] %s114
      %117 = dma.vmem_to_hbm [thread:$0]  %s115, 16, %s1, [#allocation4]
    $region9: #{tpu_custom_call.1} parent=1 // pred_fallthru
      _
    // Predicated region
    $region10: #{tpu_custom_call.1} parent=1 // pred_check
      _
    $region11: #{tpu_custom_call.1} parent=1 // pred_check_branch
      %119 = sbr.rel (0) target = $region13
    $region12: #{tpu_custom_call.1} parent=1 // pred_region
      %120 = dma.done [#allocation4], 16
    $region13: #{tpu_custom_call.1} parent=1 // pred_fallthru
      _
    %121 = vsyncpa [#allocation4], 1

</llo_original>
